<compile_context>
chip_gen: v7x
topology: tpu7x:2x2x1
jax: 0.10.0
libtpu: 0.0.40
codegen_flags: <defaults>
</compile_context>

<pallas_src>
import functools

import jax
import jax.numpy as jnp
from jax.experimental import pallas as pl
from jax.experimental.pallas import tpu as pltpu


def deepsets_kernel(x_ref,            # (TB*S, D)  one tile of flattened inputs
                    w1_ref, b1_ref,   # phi.fc1: (D, D), (1, D)
                    w2_ref, b2_ref,   # phi.fc2: (D, P), (1, P)
                    w3_ref, b3_ref,   # rho.fc1: (P, R), (1, R)
                    w4_ref, b4_ref,   # rho.fc2: (R, R), (1, R)
                    o_ref,            # (TB, R)
                    *, tile_b, set_size, fold_pool):
    x = x_ref[...]                                           # (TB*S, D)

    # ---- Phi (applied per set element; rows are independent) ----
    h1 = jnp.dot(x, w1_ref[...],
                 preferred_element_type=jnp.float32) + b1_ref[...]
    h1 = jnp.maximum(h1, 0.0)                                # ReLU (dropout = identity)
    h2 = jnp.dot(h1.astype(w2_ref.dtype), w2_ref[...],
                 preferred_element_type=jnp.float32) + b2_ref[...]   # (TB*S, P)

    if fold_pool:
        # Small-tile path: sum and matmul commute, so run rho.fc1 at M = TB*S rows
        # (keeps the MXU streaming instead of fill/drain at tiny M), then reduce
        # over the set dim at R-lane width, then add the bias once.
        r = jnp.dot(h2.astype(w3_ref.dtype), w3_ref[...],
                    preferred_element_type=jnp.float32)              # (TB*S, R)
        r1 = r.reshape(tile_b, set_size, r.shape[-1]).sum(axis=1) + b3_ref[...]
    else:
        # Large-tile path: pool first (fewer FLOPs), M = TB is already MXU-friendly.
        pooled = h2.reshape(tile_b, set_size, h2.shape[-1]).sum(axis=1)      # (TB, P)
        r1 = jnp.dot(pooled.astype(w3_ref.dtype), w3_ref[...],
                     preferred_element_type=jnp.float32) + b3_ref[...]       # (TB, R)

    # ---- Rho ----
    r1 = jnp.maximum(r1, 0.0)
    out = jnp.dot(r1.astype(w4_ref.dtype), w4_ref[...],
                  preferred_element_type=jnp.float32) + b4_ref[...]          # (TB, R)

    o_ref[...] = out.astype(o_ref.dtype)


def deepsets_forward(x, params, *, tile_b=None, compute_dtype=jnp.float32):
    """x: (B, S, D) float32.  Returns (B, 1, R) float32.

    compute_dtype=jnp.bfloat16 halves HBM traffic for x / weights (memory-bound
    regime at large B on v6e/v7x) at the cost of relaxing accuracy to ~1e-2.
    """
    B, S, D = x.shape
    w1, b1, w2, b2, w3, b3, w4, b4 = params
    P = w2.shape[1]
    R = w4.shape[1]

    if tile_b is None:
        # Large tiles for throughput (amortize ~0.35us/step overhead, >=128-row rho
        # matmuls), but keep the grid >= 2 steps when B allows so v7x's second
        # TensorCore is used.  Multiple of 8 sublanes; cap 256 keeps the per-step
        # VMEM footprint far under v5e's 16 MiB scoped default.
        tile_b = min(256, max(8, pl.cdiv(B, 2)))
        tile_b = pl.cdiv(tile_b, 8) * 8

    nb = pl.cdiv(B, tile_b)
    B_pad = nb * tile_b

    cdt = jnp.dtype(compute_dtype)

    # Pad the batch to a multiple of the batch tile; padded rows are zeros and the
    # corresponding output rows are sliced off after the kernel.
    x2 = x.reshape(B * S, D).astype(cdt)
    if B_pad != B:
        x2 = jnp.pad(x2, ((0, (B_pad - B) * S), (0, 0)))

    ws = tuple(w.astype(cdt) for w in (w1, w2, w3, w4))
    bs = (b1, b2, b3, b4)                     # biases stay f32 (added post-accum)

    # Fold the set-sum through rho.fc1 only when the tile is small; at large tile_b
    # the pooled matmul already has a large M and fewer FLOPs.
    fold_pool = tile_b < 128

    full = lambda shape: pl.BlockSpec(shape, lambda b: (0,) * len(shape))

    out = pl.pallas_call(
        functools.partial(deepsets_kernel, tile_b=tile_b, set_size=S,
                          fold_pool=fold_pool),
        out_shape=jax.ShapeDtypeStruct((B_pad, R), jnp.float32),
        grid_spec=pltpu.PrefetchScalarGridSpec(
            num_scalar_prefetch=0,
            grid=(nb,),
            in_specs=[
                pl.BlockSpec((tile_b * S, D), lambda b: (b, 0)),  # X tile
                full((D, D)), full((1, D)),                       # phi.fc1
                full((D, P)), full((1, P)),                       # phi.fc2
                full((P, R)), full((1, R)),                       # rho.fc1
                full((R, R)), full((1, R)),                       # rho.fc2
            ],
            out_specs=pl.BlockSpec((tile_b, R), lambda b: (b, 0)),
        ),
        compiler_params=pltpu.CompilerParams(
            dimension_semantics=("parallel",)),
    )(x2, ws[0], bs[0], ws[1], bs[1], ws[2], bs[2], ws[3], bs[3])

    return out[:B].reshape(B, 1, R)


def init_params(key, emb_dim, phi_out, rho_out):
    """Deterministic synthetic weights, stored as (in, out) + (1, out) bias."""
    ks = jax.random.split(key, 8)

    def lin(kw, kb, fan_in, fan_out):
        bound = 1.0 / jnp.sqrt(fan_in)
        w = jax.random.uniform(kw, (fan_in, fan_out), jnp.float32, -bound, bound)
        b = jax.random.uniform(kb, (1, fan_out), jnp.float32, -bound, bound)
        return w, b

    w1, b1 = lin(ks[0], ks[1], emb_dim, emb_dim)   # phi.fc1
    w2, b2 = lin(ks[2], ks[3], emb_dim, phi_out)   # phi.fc2
    w3, b3 = lin(ks[4], ks[5], phi_out, rho_out)   # rho.fc1
    w4, b4 = lin(ks[6], ks[7], rho_out, rho_out)   # rho.fc2
    return (w1, b1, w2, b2, w3, b3, w4, b4)


def reference_forward(x, params):
    """Pure-JAX reference matching the PyTorch forward (eval mode)."""
    w1, b1, w2, b2, w3, b3, w4, b4 = params
    h = jnp.maximum(x @ w1 + b1, 0.0)
    h = h @ w2 + b2
    pooled = jnp.sum(h, axis=1, keepdims=True)
    r = jnp.maximum(pooled @ w3 + b3, 0.0)
    return r @ w4 + b4


if __name__ == "__main__":
    B, S = 2, 8                 # batch, set size (number of video embeddings)
    emb_dim, phi_out, rho_out = 32, 64, 32

    key = jax.random.PRNGKey(0)
    kx, kp = jax.random.split(key)
    x = jax.random.normal(kx, (B, S, emb_dim), dtype=jnp.float32)
    params = init_params(kp, emb_dim, phi_out, rho_out)

    out = deepsets_forward(x, params)
    out = jax.block_until_ready(out)

    ref = reference_forward(x, params)
    assert out.shape == (B, 1, rho_out), out.shape
    assert jnp.allclose(out, ref, atol=1e-5, rtol=1e-5), float(jnp.max(jnp.abs(out - ref)))

    print("KERNEL_OK")
</pallas_src>

<mosaic_0001>
module attributes {stable_mosaic.version = 11 : i64} {
  func.func @deepsets_kernel(%arg0: i32, %arg1: memref<64x32xf32, #tpu.memory_space<vmem>>, %arg2: memref<32x32xf32, #tpu.memory_space<vmem>>, %arg3: memref<1x32xf32, #tpu.memory_space<vmem>>, %arg4: memref<32x64xf32, #tpu.memory_space<vmem>>, %arg5: memref<1x64xf32, #tpu.memory_space<vmem>>, %arg6: memref<64x32xf32, #tpu.memory_space<vmem>>, %arg7: memref<1x32xf32, #tpu.memory_space<vmem>>, %arg8: memref<32x32xf32, #tpu.memory_space<vmem>>, %arg9: memref<1x32xf32, #tpu.memory_space<vmem>>, %arg10: memref<8x32xf32, #tpu.memory_space<vmem>>) attributes {dimension_semantics = [#tpu.dimension_semantics<parallel>], iteration_bounds = array<i64: 1>, scalar_prefetch = 0 : i64, scratch_operands = 0 : i64, tpu.core_type = #tpu.core_type<tc>, window_params = [{transform_indices = @transform_0, window_bounds = array<i64: 64, 32>}, {pipeline_mode = #tpu.pipeline_mode<synchronous>, transform_indices = @transform_1, window_bounds = array<i64: 32, 32>}, {pipeline_mode = #tpu.pipeline_mode<synchronous>, transform_indices = @transform_2, window_bounds = array<i64: 1, 32>}, {pipeline_mode = #tpu.pipeline_mode<synchronous>, transform_indices = @transform_3, window_bounds = array<i64: 32, 64>}, {pipeline_mode = #tpu.pipeline_mode<synchronous>, transform_indices = @transform_4, window_bounds = array<i64: 1, 64>}, {pipeline_mode = #tpu.pipeline_mode<synchronous>, transform_indices = @transform_5, window_bounds = array<i64: 64, 32>}, {pipeline_mode = #tpu.pipeline_mode<synchronous>, transform_indices = @transform_6, window_bounds = array<i64: 1, 32>}, {pipeline_mode = #tpu.pipeline_mode<synchronous>, transform_indices = @transform_7, window_bounds = array<i64: 32, 32>}, {pipeline_mode = #tpu.pipeline_mode<synchronous>, transform_indices = @transform_8, window_bounds = array<i64: 1, 32>}, {transform_indices = @transform_9, window_bounds = array<i64: 8, 32>}]} {
    %c0 = arith.constant 0 : index
    %c0_0 = arith.constant 0 : index
    %0 = vector.load %arg1[%c0, %c0_0] : memref<64x32xf32, #tpu.memory_space<vmem>>, vector<64x32xf32>
    %c0_1 = arith.constant 0 : index
    %c0_2 = arith.constant 0 : index
    %1 = vector.load %arg2[%c0_1, %c0_2] : memref<32x32xf32, #tpu.memory_space<vmem>>, vector<32x32xf32>
    %cst = arith.constant dense<0.000000e+00> : vector<64x32xf32>
    %2 = tpu.matmul %0, %1, %cst {dimension_numbers = #tpu.dot_dimension_numbers<[1], [0], [0], [1], [0, 0, 1, 1], [], []>} : vector<64x32xf32>, vector<32x32xf32>, vector<64x32xf32> -> vector<64x32xf32>
    %c0_3 = arith.constant 0 : index
    %c0_4 = arith.constant 0 : index
    %3 = vector.load %arg3[%c0_3, %c0_4] : memref<1x32xf32, #tpu.memory_space<vmem>>, vector<1x32xf32>
    %4 = vector.broadcast %3 : vector<1x32xf32> to vector<64x32xf32>
    %5 = arith.addf %2, %4 : vector<64x32xf32>
    %cst_5 = arith.constant 0.000000e+00 : f32
    %6 = vector.broadcast %cst_5 : f32 to vector<64x32xf32>
    %7 = arith.maximumf %5, %6 : vector<64x32xf32>
    %c0_6 = arith.constant 0 : index
    %c0_7 = arith.constant 0 : index
    %8 = vector.load %arg4[%c0_6, %c0_7] : memref<32x64xf32, #tpu.memory_space<vmem>>, vector<32x64xf32>
    %cst_8 = arith.constant dense<0.000000e+00> : vector<64x64xf32>
    %9 = tpu.matmul %7, %8, %cst_8 {dimension_numbers = #tpu.dot_dimension_numbers<[1], [0], [0], [1], [0, 0, 1, 1], [], []>} : vector<64x32xf32>, vector<32x64xf32>, vector<64x64xf32> -> vector<64x64xf32>
    %c0_9 = arith.constant 0 : index
    %c0_10 = arith.constant 0 : index
    %10 = vector.load %arg5[%c0_9, %c0_10] : memref<1x64xf32, #tpu.memory_space<vmem>>, vector<1x64xf32>
    %11 = vector.broadcast %10 : vector<1x64xf32> to vector<64x64xf32>
    %12 = arith.addf %9, %11 : vector<64x64xf32>
    %c0_11 = arith.constant 0 : index
    %c0_12 = arith.constant 0 : index
    %13 = vector.load %arg6[%c0_11, %c0_12] : memref<64x32xf32, #tpu.memory_space<vmem>>, vector<64x32xf32>
    %cst_13 = arith.constant dense<0.000000e+00> : vector<64x32xf32>
    %14 = tpu.matmul %12, %13, %cst_13 {dimension_numbers = #tpu.dot_dimension_numbers<[1], [0], [0], [1], [0, 0, 1, 1], [], []>} : vector<64x64xf32>, vector<64x32xf32>, vector<64x32xf32> -> vector<64x32xf32>
    %15 = vector.shape_cast %14 : vector<64x32xf32> to vector<8x8x32xf32>
    %cst_14 = arith.constant dense<0.000000e+00> : vector<8x32xf32>
    %16 = vector.multi_reduction <add>, %15, %cst_14 [1] : vector<8x8x32xf32> to vector<8x32xf32>
    %c0_15 = arith.constant 0 : index
    %c0_16 = arith.constant 0 : index
    %17 = vector.load %arg7[%c0_15, %c0_16] : memref<1x32xf32, #tpu.memory_space<vmem>>, vector<1x32xf32>
    %18 = vector.broadcast %17 : vector<1x32xf32> to vector<8x32xf32>
    %19 = arith.addf %16, %18 : vector<8x32xf32>
    %cst_17 = arith.constant 0.000000e+00 : f32
    %20 = vector.broadcast %cst_17 : f32 to vector<8x32xf32>
    %21 = arith.maximumf %19, %20 : vector<8x32xf32>
    %c0_18 = arith.constant 0 : index
    %c0_19 = arith.constant 0 : index
    %22 = vector.load %arg8[%c0_18, %c0_19] : memref<32x32xf32, #tpu.memory_space<vmem>>, vector<32x32xf32>
    %cst_20 = arith.constant dense<0.000000e+00> : vector<8x32xf32>
    %23 = tpu.matmul %21, %22, %cst_20 {dimension_numbers = #tpu.dot_dimension_numbers<[1], [0], [0], [1], [0, 0, 1, 1], [], []>} : vector<8x32xf32>, vector<32x32xf32>, vector<8x32xf32> -> vector<8x32xf32>
    %c0_21 = arith.constant 0 : index
    %c0_22 = arith.constant 0 : index
    %24 = vector.load %arg9[%c0_21, %c0_22] : memref<1x32xf32, #tpu.memory_space<vmem>>, vector<1x32xf32>
    %25 = vector.broadcast %24 : vector<1x32xf32> to vector<8x32xf32>
    %26 = arith.addf %23, %25 : vector<8x32xf32>
    %c0_23 = arith.constant 0 : index
    %c0_24 = arith.constant 0 : index
    %27 = vector.load %arg10[%c0_23, %c0_24] : memref<8x32xf32, #tpu.memory_space<vmem>>, vector<8x32xf32>
    tpu.vector_store %arg10[%c0_23, %c0_24], %26 {strides = array<i32>} : memref<8x32xf32, #tpu.memory_space<vmem>>, vector<8x32xf32>,
    return
  }
  func.func @transform_0(%arg0: i32) -> (i32, i32) {
    %c0_i32 = arith.constant 0 : i32
    %c0_i32_0 = arith.constant 0 : i32
    return %arg0, %c0_i32 : i32, i32
  }
  func.func @transform_1(%arg0: i32) -> (i32, i32) {
    %c0_i32 = arith.constant 0 : i32
    %c0_i32_0 = arith.constant 0 : i32
    %c0_i32_1 = arith.constant 0 : i32
    return %c0_i32, %c0_i32_0 : i32, i32
  }
  func.func @transform_2(%arg0: i32) -> (i32, i32) {
    %c0_i32 = arith.constant 0 : i32
    %c0_i32_0 = arith.constant 0 : i32
    %c0_i32_1 = arith.constant 0 : i32
    return %c0_i32, %c0_i32_0 : i32, i32
  }
  func.func @transform_3(%arg0: i32) -> (i32, i32) {
    %c0_i32 = arith.constant 0 : i32
    %c0_i32_0 = arith.constant 0 : i32
    %c0_i32_1 = arith.constant 0 : i32
    return %c0_i32, %c0_i32_0 : i32, i32
  }
  func.func @transform_4(%arg0: i32) -> (i32, i32) {
    %c0_i32 = arith.constant 0 : i32
    %c0_i32_0 = arith.constant 0 : i32
    %c0_i32_1 = arith.constant 0 : i32
    return %c0_i32, %c0_i32_0 : i32, i32
  }
  func.func @transform_5(%arg0: i32) -> (i32, i32) {
    %c0_i32 = arith.constant 0 : i32
    %c0_i32_0 = arith.constant 0 : i32
    %c0_i32_1 = arith.constant 0 : i32
    return %c0_i32, %c0_i32_0 : i32, i32
  }
  func.func @transform_6(%arg0: i32) -> (i32, i32) {
    %c0_i32 = arith.constant 0 : i32
    %c0_i32_0 = arith.constant 0 : i32
    %c0_i32_1 = arith.constant 0 : i32
    return %c0_i32, %c0_i32_0 : i32, i32
  }
  func.func @transform_7(%arg0: i32) -> (i32, i32) {
    %c0_i32 = arith.constant 0 : i32
    %c0_i32_0 = arith.constant 0 : i32
    %c0_i32_1 = arith.constant 0 : i32
    return %c0_i32, %c0_i32_0 : i32, i32
  }
  func.func @transform_8(%arg0: i32) -> (i32, i32) {
    %c0_i32 = arith.constant 0 : i32
    %c0_i32_0 = arith.constant 0 : i32
    %c0_i32_1 = arith.constant 0 : i32
    return %c0_i32, %c0_i32_0 : i32, i32
  }
  func.func @transform_9(%arg0: i32) -> (i32, i32) {
    %c0_i32 = arith.constant 0 : i32
    %c0_i32_0 = arith.constant 0 : i32
    return %arg0, %c0_i32 : i32, i32
  }
}

</mosaic_0001>

<llo_original>
// kernel: tpu_custom_call.1
$region0: #{tpu_custom_call.1}
  #allocation0 [shape = 'u32[]', space=smem, size = 0x4, offset = 0x4, fixed_abs, tag = 'smem constant byte address 0x4 - core index']
  #allocation1 [shape = 'u32[144,128]{1,0:T(1,128)}', space=vmem, size = 0x12000, scoped, tag = 'internal scratch']
  %s0 = inlined_call_operand.vmem [shape: f32[64,32], index: 0, kind: input, shape index: {}]
  %s1 = inlined_call_operand.vmem [shape: f32[32,32], index: 1, kind: input, shape index: {}]
  %s2 = inlined_call_operand.vmem [shape: f32[1,32], index: 2, kind: input, shape index: {}]
  %s3 = inlined_call_operand.vmem [shape: f32[32,64], index: 3, kind: input, shape index: {}]
  %s4 = inlined_call_operand.vmem [shape: f32[1,64], index: 4, kind: input, shape index: {}]
  %s5 = inlined_call_operand.vmem [shape: f32[64,32], index: 5, kind: input, shape index: {}]
  %s6 = inlined_call_operand.vmem [shape: f32[1,32], index: 6, kind: input, shape index: {}]
  %s7 = inlined_call_operand.vmem [shape: f32[32,32], index: 7, kind: input, shape index: {}]
  %s8 = inlined_call_operand.vmem [shape: f32[1,32], index: 8, kind: input, shape index: {}]
  %s9 = inlined_call_operand.hbm [shape: f32[8,32], index: 9, kind: output, shape index: {}]
  %s10 = sld [smem:[#allocation0]]
  $region46: #{tpu_custom_call.1} parent=0
    _
  %s12 = ssub.s32 1, %s10
  %s13 = scalar_select 0, %s12, %s10
  $region1: #{tpu_custom_call.1} parent=0
    #allocation2 [shape = 'u8[4096]{0}', space=vmem, size = 0x1000, scoped, tag = 'output window, operand 0, single buffered']
    #allocation3 [shape = 's32[1]{0}', space=sflag, size = 0x4, scoped, tag = 'scoped memory for tpu_custom_call.1']
    %14 = vsyncpa [#allocation3], 0
    // Predicated region
    $region2: #{tpu_custom_call.1} parent=1 // pred_check
      _
    $region3: #{tpu_custom_call.1} parent=1 // pred_check_branch
      %16 = sbr.rel (0) target = $region5
    $region4: #{tpu_custom_call.1} parent=1 // pred_region
      _
    $region5: #{tpu_custom_call.1} parent=1 // pred_fallthru
      _
    // Predicated region
    $region6: #{tpu_custom_call.1} parent=1 // pred_check
      _
    $region7: #{tpu_custom_call.1} parent=1 // pred_check_branch
      %18 = sbr.rel (0) target = $region9
    $region8: #{tpu_custom_call.1} parent=1 // pred_region
      _
    $region9: #{tpu_custom_call.1} parent=1 // pred_fallthru
      _
    // Predicated region
    $region10: #{tpu_custom_call.1} parent=1 // pred_check
      _
    $region11: #{tpu_custom_call.1} parent=1 // pred_check_branch
      %20 = sbr.rel (0) target = $region13
    $region12: #{tpu_custom_call.1} parent=1 // pred_region
      _
    $region13: #{tpu_custom_call.1} parent=1 // pred_fallthru
      _
    // Predicated region
    $region14: #{tpu_custom_call.1} parent=1 // pred_check
      _
    $region15: #{tpu_custom_call.1} parent=1 // pred_check_branch
      %22 = sbr.rel (0) target = $region17
    $region16: #{tpu_custom_call.1} parent=1 // pred_region
      _
    $region17: #{tpu_custom_call.1} parent=1 // pred_fallthru
      _
    // Predicated region
    $region18: #{tpu_custom_call.1} parent=1 // pred_check
      _
    $region19: #{tpu_custom_call.1} parent=1 // pred_check_branch
      %24 = sbr.rel (0) target = $region21
    $region20: #{tpu_custom_call.1} parent=1 // pred_region
      _
    $region21: #{tpu_custom_call.1} parent=1 // pred_fallthru
      _
    // Predicated region
    $region22: #{tpu_custom_call.1} parent=1 // pred_check
      _
    $region23: #{tpu_custom_call.1} parent=1 // pred_check_branch
      %26 = sbr.rel (0) target = $region25
    $region24: #{tpu_custom_call.1} parent=1 // pred_region
      _
    $region25: #{tpu_custom_call.1} parent=1 // pred_fallthru
      _
    // Predicated region
    $region26: #{tpu_custom_call.1} parent=1 // pred_check
      _
    $region27: #{tpu_custom_call.1} parent=1 // pred_check_branch
      %28 = sbr.rel (0) target = $region29
    $region28: #{tpu_custom_call.1} parent=1 // pred_region
      _
    $region29: #{tpu_custom_call.1} parent=1 // pred_fallthru
      _
    // Predicated region
    $region30: #{tpu_custom_call.1} parent=1 // pred_check
      _
    $region31: #{tpu_custom_call.1} parent=1 // pred_check_branch
      %30 = sbr.rel (0) target = $region33
    $region32: #{tpu_custom_call.1} parent=1 // pred_region
      _
    $region33: #{tpu_custom_call.1} parent=1 // pred_fallthru
      _
    // Predicated region
    $region34: #{tpu_custom_call.1} parent=1 // pred_check
      _
    $region35: #{tpu_custom_call.1} parent=1 // pred_check_branch
      %32 = sbr.rel (0) target = $region37
    $region36: #{tpu_custom_call.1} parent=1 // pred_region
      _
    $region37: #{tpu_custom_call.1} parent=1 // pred_fallthru
      _
    %v33 = vld [vmem:[%s0] sm:$0xff]
    %v34 = vld [vmem:[%s0 + $0x8] sm:$0xff]
    %v35 = vld [vmem:[%s0 + $0x10] sm:$0xff]
    %v36 = vld [vmem:[%s0 + $0x18] sm:$0xff]
    %v37 = vld [vmem:[%s0 + $0x20] sm:$0xff]
    %v38 = vld [vmem:[%s0 + $0x28] sm:$0xff]
    %v39 = vld [vmem:[%s0 + $0x30] sm:$0xff]
    %v40 = vld [vmem:[%s0 + $0x38] sm:$0xff]
    %v41 = vld [vmem:[%s1] sm:$0xff]
    %v42 = vld [vmem:[%s1 + $0x8] sm:$0xff]
    %v43 = vld [vmem:[%s1 + $0x10] sm:$0xff]
    %v44 = vld [vmem:[%s1 + $0x18] sm:$0xff]
    %v45 = vld [vmem:[%s2] sm:$0x1]
    %v47 = vlaneseq
    %v48 = vshrl.u32 %v47, 7
    %v49 = vsub.s32 0, %v48
    %v50 = vrot.slane %v45, %v49
    %vm52 = vcmask 261120
    %v54 = vsel %vm52, %v33, 0
    %v57 = vsel %vm52, %v34, 0
    %v60 = vsel %vm52, %v35, 0
    %v63 = vsel %vm52, %v36, 0
    %v66 = vsel %vm52, %v37, 0
    %v69 = vsel %vm52, %v38, 0
    %v72 = vsel %vm52, %v39, 0
    %v75 = vsel %vm52, %v40, 0
    %77 = vmatprep.subr.mxu0 0.0
    %78 = vmatpush1.msra.mxu0 %v41
    %79 = vmatprep.subr.mxu0 0.0
    %80 = vmatpush1.msra.mxu0 %v42
    %81 = vmatprep.subr.mxu0 0.0
    %82 = vmatpush1.msra.mxu0 %v43
    %83 = vmatprep.subr.mxu0 0.0
    %84 = vmatpush1.msra.mxu0 %v44
    %85 = vmatprep.subr.mxu0 0.0
    %86 = vmatpush1.msra.mxu0 0.0
    %87 = vmatprep.subr.mxu0 0.0
    %88 = vmatpush1.msra.mxu0 0.0
    %89 = vmatprep.subr.mxu0 0.0
    %90 = vmatpush1.msra.mxu0 0.0
    %91 = vmatprep.subr.mxu0 0.0
    %92 = vmatpush1.msra.mxu0 0.0
    %93 = vmatprep.subr.mxu0 0.0
    %94 = vmatpush1.msra.mxu0 0.0
    %95 = vmatprep.subr.mxu0 0.0
    %96 = vmatpush1.msra.mxu0 0.0
    %97 = vmatprep.subr.mxu0 0.0
    %98 = vmatpush1.msra.mxu0 0.0
    %99 = vmatprep.subr.mxu0 0.0
    %100 = vmatpush1.msra.mxu0 0.0
    %101 = vmatprep.subr.mxu0 0.0
    %102 = vmatpush1.msra.mxu0 0.0
    %103 = vmatprep.subr.mxu0 0.0
    %104 = vmatpush1.msra.mxu0 0.0
    %105 = vmatprep.subr.mxu0 0.0
    %106 = vmatpush1.msra.mxu0 0.0
    %107 = vmatprep.subr.mxu0 0.0
    %108 = vmatpush1.msra.mxu0 0.0
    %109 = vmatprep.subr.mxu0 0.0
    %110 = vmatpush1.msra.mxu0 0.0
    %111 = vmatprep.subr.mxu0 0.0
    %112 = vmatpush1.msra.mxu0 0.0
    %113 = vmatprep.subr.mxu0 0.0
    %114 = vmatpush1.msra.mxu0 0.0
    %115 = vmatprep.subr.mxu0 0.0
    %116 = vmatpush1.msra.mxu0 0.0
    %117 = vmatprep.subr.mxu0 0.0
    %118 = vmatpush1.msra.mxu0 0.0
    %119 = vmatprep.subr.mxu0 0.0
    %120 = vmatpush1.msra.mxu0 0.0
    %121 = vmatprep.subr.mxu0 0.0
    %122 = vmatpush1.msra.mxu0 0.0
    %123 = vmatprep.subr.mxu0 0.0
    %124 = vmatpush1.msra.mxu0 0.0
    %125 = vmatprep.subr.mxu0 0.0
    %126 = vmatpush1.msra.mxu0 0.0
    %127 = vmatprep.subr.mxu0 0.0
    %128 = vmatpush1.msra.mxu0 0.0
    %129 = vmatprep.subr.mxu0 0.0
    %130 = vmatpush1.msra.mxu0 0.0
    %131 = vmatprep.subr.mxu0 0.0
    %132 = vmatpush1.msra.mxu0 0.0
    %133 = vmatprep.subr.mxu0 0.0
    %134 = vmatpush1.msra.mxu0 0.0
    %135 = vmatprep.subr.mxu0 0.0
    %136 = vmatpush1.msra.mxu0 0.0
    %137 = vmatprep.subr.mxu0 0.0
    %138 = vmatpush1.msra.mxu0 0.0
    %139 = vmatprep.subr.mxu0 0.0
    %140 = vmatpush1.msra.mxu0 0.0
    %141 = vmatprep.mubr.f32.mxu0 0.0
    %142 = vmatmul.mubr.f32.gmra.mrb[0].mxu0 %v54
    %v143 = vpop.f32.mrb[0].mxu0
    %v144 = vadd.f32 %v50, %v143
    %v145 = vpop.f32.mrb[0].mxu0
    %146 = vmatprep.mubr.f32.mxu0 0.0
    %147 = vmatmul.mubr.f32.gmra.mrb[0].mxu0 %v57
    %v148 = vpop.f32.mrb[0].mxu0
    %v149 = vadd.f32 %v50, %v148
    %v150 = vpop.f32.mrb[0].mxu0
    %151 = vmatprep.mubr.f32.mxu0 0.0
    %152 = vmatmul.mubr.f32.gmra.mrb[0].mxu0 %v60
    %v153 = vpop.f32.mrb[0].mxu0
    %v154 = vadd.f32 %v50, %v153
    %v155 = vpop.f32.mrb[0].mxu0
    %156 = vmatprep.mubr.f32.mxu0 0.0
    %157 = vmatmul.mubr.f32.gmra.mrb[0].mxu0 %v63
    %v158 = vpop.f32.mrb[0].mxu0
    %v159 = vadd.f32 %v50, %v158
    %v160 = vpop.f32.mrb[0].mxu0
    %161 = vmatprep.mubr.f32.mxu0 0.0
    %162 = vmatmul.mubr.f32.gmra.mrb[0].mxu0 %v66
    %v163 = vpop.f32.mrb[0].mxu0
    %v164 = vadd.f32 %v50, %v163
    %v165 = vpop.f32.mrb[0].mxu0
    %166 = vmatprep.mubr.f32.mxu0 0.0
    %167 = vmatmul.mubr.f32.gmra.mrb[0].mxu0 %v69
    %v168 = vpop.f32.mrb[0].mxu0
    %v169 = vadd.f32 %v50, %v168
    %v170 = vpop.f32.mrb[0].mxu0
    %171 = vmatprep.mubr.f32.mxu0 0.0
    %172 = vmatmul.mubr.f32.gmra.mrb[0].mxu0 %v72
    %v173 = vpop.f32.mrb[0].mxu0
    %v174 = vadd.f32 %v50, %v173
    %v175 = vpop.f32.mrb[0].mxu0
    %176 = vmatprep.mubr.f32.mxu0 0.0
    %177 = vmatmul.mubr.f32.gmra.mrb[0].mxu0 %v75
    %v178 = vpop.f32.mrb[0].mxu0
    %v179 = vadd.f32 %v50, %v178
    %v180 = vpop.f32.mrb[0].mxu0
    %181 = vdwg.mxu0
    %v182 = vmax.f32 %v144, 0.0
    %v183 = vmax.f32 %v149, 0.0
    %v184 = vmax.f32 %v154, 0.0
    %v185 = vmax.f32 %v159, 0.0
    %v186 = vmax.f32 %v164, 0.0
    %v187 = vmax.f32 %v169, 0.0
    %v188 = vmax.f32 %v174, 0.0
    %v189 = vmax.f32 %v179, 0.0
    %v190 = vld [vmem:[%s3] sm:$0xff]
    %v191 = vld [vmem:[%s3 + $0x8] sm:$0xff]
    %v192 = vld [vmem:[%s3 + $0x10] sm:$0xff]
    %v193 = vld [vmem:[%s3 + $0x18] sm:$0xff]
    %v194 = vld [vmem:[%s4] sm:$0x1]
    %v196 = vlaneseq
    %v197 = vshrl.u32 %v196, 7
    %v198 = vsub.s32 0, %v197
    %v199 = vrot.slane %v194, %v198
    %v202 = vsel %vm52, %v182, 0
    %v205 = vsel %vm52, %v183, 0
    %v208 = vsel %vm52, %v184, 0
    %v211 = vsel %vm52, %v185, 0
    %v214 = vsel %vm52, %v186, 0
    %v217 = vsel %vm52, %v187, 0
    %v220 = vsel %vm52, %v188, 0
    %v223 = vsel %vm52, %v189, 0
    %225 = vmatprep.subr.mxu0 0.0
    %226 = vmatpush1.msra.mxu0 %v190
    %227 = vmatprep.subr.mxu0 0.0
    %228 = vmatpush1.msra.mxu0 %v191
    %229 = vmatprep.subr.mxu0 0.0
    %230 = vmatpush1.msra.mxu0 %v192
    %231 = vmatprep.subr.mxu0 0.0
    %232 = vmatpush1.msra.mxu0 %v193
    %233 = vmatprep.subr.mxu0 0.0
    %234 = vmatpush1.msra.mxu0 0.0
    %235 = vmatprep.subr.mxu0 0.0
    %236 = vmatpush1.msra.mxu0 0.0
    %237 = vmatprep.subr.mxu0 0.0
    %238 = vmatpush1.msra.mxu0 0.0
    %239 = vmatprep.subr.mxu0 0.0
    %240 = vmatpush1.msra.mxu0 0.0
    %241 = vmatprep.subr.mxu0 0.0
    %242 = vmatpush1.msra.mxu0 0.0
    %243 = vmatprep.subr.mxu0 0.0
    %244 = vmatpush1.msra.mxu0 0.0
    %245 = vmatprep.subr.mxu0 0.0
    %246 = vmatpush1.msra.mxu0 0.0
    %247 = vmatprep.subr.mxu0 0.0
    %248 = vmatpush1.msra.mxu0 0.0
    %249 = vmatprep.subr.mxu0 0.0
    %250 = vmatpush1.msra.mxu0 0.0
    %251 = vmatprep.subr.mxu0 0.0
    %252 = vmatpush1.msra.mxu0 0.0
    %253 = vmatprep.subr.mxu0 0.0
    %254 = vmatpush1.msra.mxu0 0.0
    %255 = vmatprep.subr.mxu0 0.0
    %256 = vmatpush1.msra.mxu0 0.0
    %257 = vmatprep.subr.mxu0 0.0
    %258 = vmatpush1.msra.mxu0 0.0
    %259 = vmatprep.subr.mxu0 0.0
    %260 = vmatpush1.msra.mxu0 0.0
    %261 = vmatprep.subr.mxu0 0.0
    %262 = vmatpush1.msra.mxu0 0.0
    %263 = vmatprep.subr.mxu0 0.0
    %264 = vmatpush1.msra.mxu0 0.0
    %265 = vmatprep.subr.mxu0 0.0
    %266 = vmatpush1.msra.mxu0 0.0
    %267 = vmatprep.subr.mxu0 0.0
    %268 = vmatpush1.msra.mxu0 0.0
    %269 = vmatprep.subr.mxu0 0.0
    %270 = vmatpush1.msra.mxu0 0.0
    %271 = vmatprep.subr.mxu0 0.0
    %272 = vmatpush1.msra.mxu0 0.0
    %273 = vmatprep.subr.mxu0 0.0
    %274 = vmatpush1.msra.mxu0 0.0
    %275 = vmatprep.subr.mxu0 0.0
    %276 = vmatpush1.msra.mxu0 0.0
    %277 = vmatprep.subr.mxu0 0.0
    %278 = vmatpush1.msra.mxu0 0.0
    %279 = vmatprep.subr.mxu0 0.0
    %280 = vmatpush1.msra.mxu0 0.0
    %281 = vmatprep.subr.mxu0 0.0
    %282 = vmatpush1.msra.mxu0 0.0
    %283 = vmatprep.subr.mxu0 0.0
    %284 = vmatpush1.msra.mxu0 0.0
    %285 = vmatprep.subr.mxu0 0.0
    %286 = vmatpush1.msra.mxu0 0.0
    %287 = vmatprep.subr.mxu0 0.0
    %288 = vmatpush1.msra.mxu0 0.0
    %289 = vmatprep.mubr.f32.mxu0 0.0
    %290 = vmatmul.mubr.f32.gmra.mrb[0].mxu0 %v202
    %v291 = vpop.f32.mrb[0].mxu0
    %v292 = vadd.f32 %v199, %v291
    %v293 = vpop.f32.mrb[0].mxu0
    %294 = vmatprep.mubr.f32.mxu0 0.0
    %295 = vmatmul.mubr.f32.gmra.mrb[0].mxu0 %v205
    %v296 = vpop.f32.mrb[0].mxu0
    %v297 = vadd.f32 %v199, %v296
    %v298 = vpop.f32.mrb[0].mxu0
    %299 = vmatprep.mubr.f32.mxu0 0.0
    %300 = vmatmul.mubr.f32.gmra.mrb[0].mxu0 %v208
    %v301 = vpop.f32.mrb[0].mxu0
    %v302 = vadd.f32 %v199, %v301
    %v303 = vpop.f32.mrb[0].mxu0
    %304 = vmatprep.mubr.f32.mxu0 0.0
    %305 = vmatmul.mubr.f32.gmra.mrb[0].mxu0 %v211
    %v306 = vpop.f32.mrb[0].mxu0
    %v307 = vadd.f32 %v199, %v306
    %v308 = vpop.f32.mrb[0].mxu0
    %309 = vmatprep.mubr.f32.mxu0 0.0
    %310 = vmatmul.mubr.f32.gmra.mrb[0].mxu0 %v214
    %v311 = vpop.f32.mrb[0].mxu0
    %v312 = vadd.f32 %v199, %v311
    %v313 = vpop.f32.mrb[0].mxu0
    %314 = vmatprep.mubr.f32.mxu0 0.0
    %315 = vmatmul.mubr.f32.gmra.mrb[0].mxu0 %v217
    %v316 = vpop.f32.mrb[0].mxu0
    %v317 = vadd.f32 %v199, %v316
    %v318 = vpop.f32.mrb[0].mxu0
    %319 = vmatprep.mubr.f32.mxu0 0.0
    %320 = vmatmul.mubr.f32.gmra.mrb[0].mxu0 %v220
    %v321 = vpop.f32.mrb[0].mxu0
    %v322 = vadd.f32 %v199, %v321
    %v323 = vpop.f32.mrb[0].mxu0
    %324 = vmatprep.mubr.f32.mxu0 0.0
    %325 = vmatmul.mubr.f32.gmra.mrb[0].mxu0 %v223
    %v326 = vpop.f32.mrb[0].mxu0
    %v327 = vadd.f32 %v199, %v326
    %v328 = vpop.f32.mrb[0].mxu0
    %329 = vdwg.mxu0
    %v330 = vld [vmem:[%s5] sm:$0xff]
    %v331 = vld [vmem:[%s5 + $0x8] sm:$0xff]
    %v332 = vld [vmem:[%s5 + $0x10] sm:$0xff]
    %v333 = vld [vmem:[%s5 + $0x18] sm:$0xff]
    %v334 = vld [vmem:[%s5 + $0x20] sm:$0xff]
    %v335 = vld [vmem:[%s5 + $0x28] sm:$0xff]
    %v336 = vld [vmem:[%s5 + $0x30] sm:$0xff]
    %v337 = vld [vmem:[%s5 + $0x38] sm:$0xff]
    %vm338 = vcmask 523264
    %v340 = vsel %vm338, %v292, 0
    %v343 = vsel %vm338, %v297, 0
    %v346 = vsel %vm338, %v302, 0
    %v349 = vsel %vm338, %v307, 0
    %v352 = vsel %vm338, %v312, 0
    %v355 = vsel %vm338, %v317, 0
    %v358 = vsel %vm338, %v322, 0
    %v361 = vsel %vm338, %v327, 0
    %363 = vmatprep.subr.mxu0 0.0
    %364 = vmatpush1.msra.mxu0 %v330
    %365 = vmatprep.subr.mxu0 0.0
    %366 = vmatpush1.msra.mxu0 %v331
    %367 = vmatprep.subr.mxu0 0.0
    %368 = vmatpush1.msra.mxu0 %v332
    %369 = vmatprep.subr.mxu0 0.0
    %370 = vmatpush1.msra.mxu0 %v333
    %371 = vmatprep.subr.mxu0 0.0
    %372 = vmatpush1.msra.mxu0 %v334
    %373 = vmatprep.subr.mxu0 0.0
    %374 = vmatpush1.msra.mxu0 %v335
    %375 = vmatprep.subr.mxu0 0.0
    %376 = vmatpush1.msra.mxu0 %v336
    %377 = vmatprep.subr.mxu0 0.0
    %378 = vmatpush1.msra.mxu0 %v337
    %379 = vmatprep.subr.mxu0 0.0
    %380 = vmatpush1.msra.mxu0 0.0
    %381 = vmatprep.subr.mxu0 0.0
    %382 = vmatpush1.msra.mxu0 0.0
    %383 = vmatprep.subr.mxu0 0.0
    %384 = vmatpush1.msra.mxu0 0.0
    %385 = vmatprep.subr.mxu0 0.0
    %386 = vmatpush1.msra.mxu0 0.0
    %387 = vmatprep.subr.mxu0 0.0
    %388 = vmatpush1.msra.mxu0 0.0
    %389 = vmatprep.subr.mxu0 0.0
    %390 = vmatpush1.msra.mxu0 0.0
    %391 = vmatprep.subr.mxu0 0.0
    %392 = vmatpush1.msra.mxu0 0.0
    %393 = vmatprep.subr.mxu0 0.0
    %394 = vmatpush1.msra.mxu0 0.0
    %395 = vmatprep.subr.mxu0 0.0
    %396 = vmatpush1.msra.mxu0 0.0
    %397 = vmatprep.subr.mxu0 0.0
    %398 = vmatpush1.msra.mxu0 0.0
    %399 = vmatprep.subr.mxu0 0.0
    %400 = vmatpush1.msra.mxu0 0.0
    %401 = vmatprep.subr.mxu0 0.0
    %402 = vmatpush1.msra.mxu0 0.0
    %403 = vmatprep.subr.mxu0 0.0
    %404 = vmatpush1.msra.mxu0 0.0
    %405 = vmatprep.subr.mxu0 0.0
    %406 = vmatpush1.msra.mxu0 0.0
    %407 = vmatprep.subr.mxu0 0.0
    %408 = vmatpush1.msra.mxu0 0.0
    %409 = vmatprep.subr.mxu0 0.0
    %410 = vmatpush1.msra.mxu0 0.0
    %411 = vmatprep.subr.mxu0 0.0
    %412 = vmatpush1.msra.mxu0 0.0
    %413 = vmatprep.subr.mxu0 0.0
    %414 = vmatpush1.msra.mxu0 0.0
    %415 = vmatprep.subr.mxu0 0.0
    %416 = vmatpush1.msra.mxu0 0.0
    %417 = vmatprep.subr.mxu0 0.0
    %418 = vmatpush1.msra.mxu0 0.0
    %419 = vmatprep.subr.mxu0 0.0
    %420 = vmatpush1.msra.mxu0 0.0
    %421 = vmatprep.subr.mxu0 0.0
    %422 = vmatpush1.msra.mxu0 0.0
    %423 = vmatprep.subr.mxu0 0.0
    %424 = vmatpush1.msra.mxu0 0.0
    %425 = vmatprep.subr.mxu0 0.0
    %426 = vmatpush1.msra.mxu0 0.0
    %427 = vmatprep.mubr.f32.mxu0 0.0
    %428 = vmatmul.mubr.f32.gmra.mrb[0].mxu0 %v340
    %v429 = vpop.f32.mrb[0].mxu0
    %v430 = vadd.f32 0.0, %v429
    %v431 = vpop.f32.mrb[0].mxu0
    %432 = vmatprep.mubr.f32.mxu0 0.0
    %433 = vmatmul.mubr.f32.gmra.mrb[0].mxu0 %v343
    %v434 = vpop.f32.mrb[0].mxu0
    %v435 = vadd.f32 0.0, %v434
    %v436 = vpop.f32.mrb[0].mxu0
    %437 = vmatprep.mubr.f32.mxu0 0.0
    %438 = vmatmul.mubr.f32.gmra.mrb[0].mxu0 %v346
    %v439 = vpop.f32.mrb[0].mxu0
    %v440 = vadd.f32 0.0, %v439
    %v441 = vpop.f32.mrb[0].mxu0
    %442 = vmatprep.mubr.f32.mxu0 0.0
    %443 = vmatmul.mubr.f32.gmra.mrb[0].mxu0 %v349
    %v444 = vpop.f32.mrb[0].mxu0
    %v445 = vadd.f32 0.0, %v444
    %v446 = vpop.f32.mrb[0].mxu0
    %447 = vmatprep.mubr.f32.mxu0 0.0
    %448 = vmatmul.mubr.f32.gmra.mrb[0].mxu0 %v352
    %v449 = vpop.f32.mrb[0].mxu0
    %v450 = vadd.f32 0.0, %v449
    %v451 = vpop.f32.mrb[0].mxu0
    %452 = vmatprep.mubr.f32.mxu0 0.0
    %453 = vmatmul.mubr.f32.gmra.mrb[0].mxu0 %v355
    %v454 = vpop.f32.mrb[0].mxu0
    %v455 = vadd.f32 0.0, %v454
    %v456 = vpop.f32.mrb[0].mxu0
    %457 = vmatprep.mubr.f32.mxu0 0.0
    %458 = vmatmul.mubr.f32.gmra.mrb[0].mxu0 %v358
    %v459 = vpop.f32.mrb[0].mxu0
    %v460 = vadd.f32 0.0, %v459
    %v461 = vpop.f32.mrb[0].mxu0
    %462 = vmatprep.mubr.f32.mxu0 0.0
    %463 = vmatmul.mubr.f32.gmra.mrb[0].mxu0 %v361
    %v464 = vpop.f32.mrb[0].mxu0
    %v465 = vadd.f32 0.0, %v464
    %v466 = vpop.f32.mrb[0].mxu0
    %467 = vdwg.mxu0
    %v468 = vsel %vm52, %v430, 0.0
    %v469 = vrot.slane %v468, 4
    %v470 = vadd.f32 %v468, %v469
    %v471 = vrot.slane %v470, 2
    %v472 = vadd.f32 %v470, %v471
    %v473 = vrot.slane %v472, 1
    %v474 = vadd.f32 %v472, %v473
    %v475 = vsel %vm52, %v435, 0.0
    %v476 = vrot.slane %v475, 4
    %v477 = vadd.f32 %v475, %v476
    %v478 = vrot.slane %v477, 2
    %v479 = vadd.f32 %v477, %v478
    %v480 = vrot.slane %v479, 1
    %v481 = vadd.f32 %v479, %v480
    %v482 = vsel %vm52, %v440, 0.0
    %v483 = vrot.slane %v482, 4
    %v484 = vadd.f32 %v482, %v483
    %v485 = vrot.slane %v484, 2
    %v486 = vadd.f32 %v484, %v485
    %v487 = vrot.slane %v486, 1
    %v488 = vadd.f32 %v486, %v487
    %v489 = vsel %vm52, %v445, 0.0
    %v490 = vrot.slane %v489, 4
    %v491 = vadd.f32 %v489, %v490
    %v492 = vrot.slane %v491, 2
    %v493 = vadd.f32 %v491, %v492
    %v494 = vrot.slane %v493, 1
    %v495 = vadd.f32 %v493, %v494
    %v496 = vsel %vm52, %v450, 0.0
    %v497 = vrot.slane %v496, 4
    %v498 = vadd.f32 %v496, %v497
    %v499 = vrot.slane %v498, 2
    %v500 = vadd.f32 %v498, %v499
    %v501 = vrot.slane %v500, 1
    %v502 = vadd.f32 %v500, %v501
    %v503 = vsel %vm52, %v455, 0.0
    %v504 = vrot.slane %v503, 4
    %v505 = vadd.f32 %v503, %v504
    %v506 = vrot.slane %v505, 2
    %v507 = vadd.f32 %v505, %v506
    %v508 = vrot.slane %v507, 1
    %v509 = vadd.f32 %v507, %v508
    %v510 = vsel %vm52, %v460, 0.0
    %v511 = vrot.slane %v510, 4
    %v512 = vadd.f32 %v510, %v511
    %v513 = vrot.slane %v512, 2
    %v514 = vadd.f32 %v512, %v513
    %v515 = vrot.slane %v514, 1
    %v516 = vadd.f32 %v514, %v515
    %v517 = vsel %vm52, %v465, 0.0
    %v518 = vrot.slane %v517, 4
    %v519 = vadd.f32 %v517, %v518
    %v520 = vrot.slane %v519, 2
    %v521 = vadd.f32 %v519, %v520
    %v522 = vrot.slane %v521, 1
    %v523 = vadd.f32 %v521, %v522
    %v524 = vld [vmem:[%s6] sm:$0x1]
    %v526 = vlaneseq
    %v527 = vshrl.u32 %v526, 7
    %v528 = vsub.s32 0, %v527
    %v529 = vrot.slane %v524, %v528
    %v531 = vadd.f32 %v474, %v529
    %v532 = vadd.f32 %v481, %v529
    %v533 = vadd.f32 %v488, %v529
    %v534 = vadd.f32 %v495, %v529
    %v535 = vadd.f32 %v502, %v529
    %v536 = vadd.f32 %v509, %v529
    %v537 = vadd.f32 %v516, %v529
    %v538 = vadd.f32 %v523, %v529
    %v539 = vmax.f32 %v531, 0.0
    %v540 = vmax.f32 %v532, 0.0
    %v541 = vmax.f32 %v533, 0.0
    %v542 = vmax.f32 %v534, 0.0
    %v543 = vmax.f32 %v535, 0.0
    %v544 = vmax.f32 %v536, 0.0
    %v545 = vmax.f32 %v537, 0.0
    %v546 = vmax.f32 %v538, 0.0
    %v547 = vld [vmem:[%s7] sm:$0xff]
    %v548 = vld [vmem:[%s7 + $0x8] sm:$0xff]
    %v549 = vld [vmem:[%s7 + $0x10] sm:$0xff]
    %v550 = vld [vmem:[%s7 + $0x18] sm:$0xff]
    %v551 = vld [vmem:[%s8] sm:$0x1]
    %v553 = vlaneseq
    %v554 = vshrl.u32 %v553, 7
    %v555 = vsub.s32 0, %v554
    %v556 = vrot.slane %v551, %v555
    %v566 = vrot.slane %v540, 7
    %vm567 = vcmask 1041409
    %v568 = vsel %vm567, %v566, %v539
    %v569 = vrot.slane %v541, 6
    %vm570 = vcmask 1042434
    %v571 = vsel %vm570, %v569, %v568
    %v572 = vrot.slane %v542, 5
    %vm573 = vcmask 1043459
    %v574 = vsel %vm573, %v572, %v571
    %v575 = vrot.slane %v543, 4
    %vm576 = vcmask 1044484
    %v577 = vsel %vm576, %v575, %v574
    %v578 = vrot.slane %v544, 3
    %vm579 = vcmask 1045509
    %v580 = vsel %vm579, %v578, %v577
    %v581 = vrot.slane %v545, 2
    %vm582 = vcmask 1046534
    %v583 = vsel %vm582, %v581, %v580
    %v584 = vrot.slane %v546, 1
    %vm585 = vcmask 1047559
    %v586 = vsel %vm585, %v584, %v583
    %v587 = vsel %vm52, %v586, 0
    %589 = vmatprep.subr.mxu0 0.0
    %590 = vmatpush1.msra.mxu0 %v547
    %591 = vmatprep.subr.mxu0 0.0
    %592 = vmatpush1.msra.mxu0 %v548
    %593 = vmatprep.subr.mxu0 0.0
    %594 = vmatpush1.msra.mxu0 %v549
    %595 = vmatprep.subr.mxu0 0.0
    %596 = vmatpush1.msra.mxu0 %v550
    %597 = vmatprep.subr.mxu0 0.0
    %598 = vmatpush1.msra.mxu0 0.0
    %599 = vmatprep.subr.mxu0 0.0
    %600 = vmatpush1.msra.mxu0 0.0
    %601 = vmatprep.subr.mxu0 0.0
    %602 = vmatpush1.msra.mxu0 0.0
    %603 = vmatprep.subr.mxu0 0.0
    %604 = vmatpush1.msra.mxu0 0.0
    %605 = vmatprep.subr.mxu0 0.0
    %606 = vmatpush1.msra.mxu0 0.0
    %607 = vmatprep.subr.mxu0 0.0
    %608 = vmatpush1.msra.mxu0 0.0
    %609 = vmatprep.subr.mxu0 0.0
    %610 = vmatpush1.msra.mxu0 0.0
    %611 = vmatprep.subr.mxu0 0.0
    %612 = vmatpush1.msra.mxu0 0.0
    %613 = vmatprep.subr.mxu0 0.0
    %614 = vmatpush1.msra.mxu0 0.0
    %615 = vmatprep.subr.mxu0 0.0
    %616 = vmatpush1.msra.mxu0 0.0
    %617 = vmatprep.subr.mxu0 0.0
    %618 = vmatpush1.msra.mxu0 0.0
    %619 = vmatprep.subr.mxu0 0.0
    %620 = vmatpush1.msra.mxu0 0.0
    %621 = vmatprep.subr.mxu0 0.0
    %622 = vmatpush1.msra.mxu0 0.0
    %623 = vmatprep.subr.mxu0 0.0
    %624 = vmatpush1.msra.mxu0 0.0
    %625 = vmatprep.subr.mxu0 0.0
    %626 = vmatpush1.msra.mxu0 0.0
    %627 = vmatprep.subr.mxu0 0.0
    %628 = vmatpush1.msra.mxu0 0.0
    %629 = vmatprep.subr.mxu0 0.0
    %630 = vmatpush1.msra.mxu0 0.0
    %631 = vmatprep.subr.mxu0 0.0
    %632 = vmatpush1.msra.mxu0 0.0
    %633 = vmatprep.subr.mxu0 0.0
    %634 = vmatpush1.msra.mxu0 0.0
    %635 = vmatprep.subr.mxu0 0.0
    %636 = vmatpush1.msra.mxu0 0.0
    %637 = vmatprep.subr.mxu0 0.0
    %638 = vmatpush1.msra.mxu0 0.0
    %639 = vmatprep.subr.mxu0 0.0
    %640 = vmatpush1.msra.mxu0 0.0
    %641 = vmatprep.subr.mxu0 0.0
    %642 = vmatpush1.msra.mxu0 0.0
    %643 = vmatprep.subr.mxu0 0.0
    %644 = vmatpush1.msra.mxu0 0.0
    %645 = vmatprep.subr.mxu0 0.0
    %646 = vmatpush1.msra.mxu0 0.0
    %647 = vmatprep.subr.mxu0 0.0
    %648 = vmatpush1.msra.mxu0 0.0
    %649 = vmatprep.subr.mxu0 0.0
    %650 = vmatpush1.msra.mxu0 0.0
    %651 = vmatprep.subr.mxu0 0.0
    %652 = vmatpush1.msra.mxu0 0.0
    %653 = vmatprep.mubr.f32.mxu0 0.0
    %654 = vmatmul.mubr.f32.gmra.mrb[0].mxu0 %v587
    %v655 = vpop.f32.mrb[0].mxu0
    %v656 = vadd.f32 %v556, %v655
    %v657 = vpop.f32.mrb[0].mxu0
    %658 = vdwg.mxu0
    %659 = vst.msk [vmem:[#allocation2] sm:$0xff] %vm52, %v656
    // Predicated region
    $region38: #{tpu_custom_call.1} parent=1 // pred_check
      _
    $region39: #{tpu_custom_call.1} parent=1 // pred_check_branch
      %661 = sbr.rel (0) target = $region41
    $region40: #{tpu_custom_call.1} parent=1 // pred_region
      %s663 = ssub.s32 128, 128
      %664 = vsyncadd [#allocation3], %s663
      %s666 = sshll.u32 [#allocation2], 4
      %s667 = int_to_ptr.vmem [resolvable:$true] %s666
      %669 = dma.vmem_to_hbm [thread:$0]  %s667, 128, %s9, [#allocation3]
    $region41: #{tpu_custom_call.1} parent=1 // pred_fallthru
      _
    // Predicated region
    $region42: #{tpu_custom_call.1} parent=1 // pred_check
      _
    $region43: #{tpu_custom_call.1} parent=1 // pred_check_branch
      %671 = sbr.rel (0) target = $region45
    $region44: #{tpu_custom_call.1} parent=1 // pred_region
      %672 = dma.done [#allocation3], 128
    $region45: #{tpu_custom_call.1} parent=1 // pred_fallthru
      _
    %673 = vsyncpa [#allocation3], 1

</llo_original>
